<compile_context>
chip_gen: v6e
topology: v6e:2x2x1
jax: 0.10.0
libtpu: 0.0.40
codegen_flags: <defaults>
</compile_context>

<pallas_src>
import functools

import jax
import jax.numpy as jnp
from jax import lax
from jax.experimental import pallas as pl
from jax.experimental.pallas import tpu as pltpu

LANE = 128
SUBLANE = 8
TILE_ELEMS = SUBLANE * LANE          # 1024: alignment granularity for the kernel prefix
CHUNK_ROWS = 512                     # in-kernel compute chunk: (512,128) f32 = 256 KiB/value
MAX_BLOCK_ROWS = 8192                # (8192,128) f32 = 4 MiB/input/block -> 8 MiB step payload
NUM_SPLITS = 2                       # leading "parallel" grid axis (v7x megacore split)
VMEM_LIMIT_BYTES = 40 * 1024 * 1024  # 16 MiB double-buffered inputs + chunk temps + headroom
                                     # (explicit bump for v5e's 16 MiB default; <= v7x 64 MiB)


def _tile_sum(x):
    """(rows, LANE) f32 -> (SUBLANE, LANE): sum groups of 8 sublanes (pure VPU adds)."""
    return jnp.sum(x.reshape(-1, SUBLANE, LANE), axis=0)


def _wbce_kernel(logit_ref, truth_ref, out_ref, acc_ref, *,
                 n_valid, block_rows, chunk_rows, blocks_per_split):
    c = pl.program_id(0)   # split ("parallel") axis
    j = pl.program_id(1)   # sequential reduction axis

    @pl.when(j == 0)
    def _init():
        acc_ref[...] = jnp.zeros_like(acc_ref)

    block_row0 = (c * blocks_per_split + j) * block_rows
    num_chunks = block_rows // chunk_rows

    @pl.loop(0, num_chunks)
    def _chunk(ci):
        r0 = pl.multiple_of(ci * chunk_rows, chunk_rows)
        p = logit_ref[pl.ds(r0, chunk_rows), :].astype(jnp.float32)
        t = truth_ref[pl.ds(r0, chunk_rows), :].astype(jnp.float32)

        # PyTorch F.binary_cross_entropy clamps the log terms at -100.  Two logs keep
        # exact semantics for soft labels (single-log trick only valid for binary truth).
        log_p = jnp.maximum(jnp.log(p), -100.0)
        log_1mp = jnp.maximum(jnp.log(1.0 - p), -100.0)
        bce = -(t * log_p + (1.0 - t) * log_1mp)
        pos_m = t > 0.5
        neg_m = t < 0.5

        chunk_row0 = block_row0 + ci * chunk_rows
        is_full = (chunk_row0 + chunk_rows) * LANE <= n_valid

        @pl.when(is_full)
        def _fast():
            # Steady state: no iota, no index math, no validity masking.
            acc_ref[0] += _tile_sum(jnp.where(pos_m, 1.0, 0.0))
            acc_ref[1] += _tile_sum(jnp.where(neg_m, 1.0, 0.0))
            acc_ref[2] += _tile_sum(jnp.where(pos_m, bce, 0.0))
            acc_ref[3] += _tile_sum(jnp.where(neg_m, bce, 0.0))

        @pl.when(jnp.logical_not(is_full))
        def _slow():
            # Only chunks that overhang the valid range (ragged / overhanging last block
            # / clamped duplicate blocks of the split) pay for the masking.
            rid = lax.broadcasted_iota(jnp.int32, p.shape, 0)
            lid = lax.broadcasted_iota(jnp.int32, p.shape, 1)
            valid = (chunk_row0 + rid) * LANE + lid < n_valid
            pm = valid & pos_m
            nm = valid & neg_m
            acc_ref[0] += _tile_sum(jnp.where(pm, 1.0, 0.0))
            acc_ref[1] += _tile_sum(jnp.where(nm, 1.0, 0.0))
            acc_ref[2] += _tile_sum(jnp.where(pm, bce, 0.0))   # select also kills NaN from OOB reads
            acc_ref[3] += _tile_sum(jnp.where(nm, bce, 0.0))

    @pl.when(j == pl.num_programs(1) - 1)
    def _finalize():
        out_ref[...] = acc_ref[...][None]


def _partial_terms(p, t):
    """Pure-JAX (pos_cnt, neg_cnt, pos_bce_sum, neg_bce_sum) for a small 1-D tail."""
    p = p.astype(jnp.float32)
    t = t.astype(jnp.float32)
    bce = -(t * jnp.maximum(jnp.log(p), -100.0)
            + (1.0 - t) * jnp.maximum(jnp.log(1.0 - p), -100.0))
    pos = t > 0.5
    neg = t < 0.5
    return jnp.stack([jnp.sum(jnp.where(pos, 1.0, 0.0)),
                      jnp.sum(jnp.where(neg, 1.0, 0.0)),
                      jnp.sum(jnp.where(pos, bce, 0.0)),
                      jnp.sum(jnp.where(neg, bce, 0.0))])


def weighted_bce(logit_pixel, truth_pixel, weights=(0.4, 0.6)):
    flat_l = logit_pixel.reshape(-1)   # keep source dtype; upcast happens in-kernel
    flat_t = truth_pixel.reshape(-1)
    assert flat_l.shape == flat_t.shape

    n = flat_l.shape[0]
    n_aligned = (n // TILE_ELEMS) * TILE_ELEMS

    sums = jnp.zeros((4,), jnp.float32)   # [pos_cnt, neg_cnt, pos_bce, neg_bce]

    if n_aligned > 0:
        # Common case (n % 1024 == 0): no pad / no slice -> one clean streaming pass.
        # Ragged case: kernel handles the 1024-aligned prefix (one contiguous prefix
        # slice); the <1024-element tail is added by the tiny pure-JAX epilogue below.
        pre_l = flat_l if n_aligned == n else flat_l[:n_aligned]
        pre_t = flat_t if n_aligned == n else flat_t[:n_aligned]
        rows = n_aligned // LANE            # multiple of 8 by construction
        l2 = pre_l.reshape(rows, LANE)
        t2 = pre_t.reshape(rows, LANE)

        if rows <= CHUNK_ROWS:
            block_rows = rows               # full extent for small inputs
        else:
            block_rows = min(MAX_BLOCK_ROWS, (rows // CHUNK_ROWS) * CHUNK_ROWS)
        chunk_rows = min(CHUNK_ROWS, block_rows)
        total_blocks = pl.cdiv(rows, block_rows)
        bps = pl.cdiv(total_blocks, NUM_SPLITS)   # blocks per split

        def in_map(c, j):
            # Clamp so steps past the end re-read the last real block; their
            # contribution is fully masked in-kernel (global index >= n_aligned).
            return (jnp.minimum(c * bps + j, total_blocks - 1), 0)

        kernel = functools.partial(
            _wbce_kernel, n_valid=n_aligned, block_rows=block_rows,
            chunk_rows=chunk_rows, blocks_per_split=bps)

        partials = pl.pallas_call(
            kernel,
            out_shape=jax.ShapeDtypeStruct((NUM_SPLITS, 4, SUBLANE, LANE), jnp.float32),
            grid_spec=pltpu.PrefetchScalarGridSpec(
                num_scalar_prefetch=0,
                grid=(NUM_SPLITS, bps),
                in_specs=[
                    pl.BlockSpec((block_rows, LANE), in_map),
                    pl.BlockSpec((block_rows, LANE), in_map),
                ],
                out_specs=pl.BlockSpec((1, 4, SUBLANE, LANE),
                                       lambda c, j: (c, 0, 0, 0)),
                scratch_shapes=[pltpu.VMEM((4, SUBLANE, LANE), jnp.float32)],
            ),
            compiler_params=pltpu.CompilerParams(
                dimension_semantics=("parallel", "arbitrary"),
                vmem_limit_bytes=VMEM_LIMIT_BYTES),
        )(l2, t2)

        sums = sums + jnp.sum(partials, axis=(0, 2, 3))

    if n_aligned < n:
        sums = sums + _partial_terms(flat_l[n_aligned:], flat_t[n_aligned:])

    pos_sum, neg_sum, pos_bce_sum, neg_bce_sum = sums[0], sums[1], sums[2], sums[3]
    w_pos, w_neg = float(weights[0]), float(weights[1])
    # Mirrors the PyTorch host-side .item() scalar math (kept on-device here).
    return (w_pos * pos_bce_sum / (pos_sum + 1e-12)
            + w_neg * neg_bce_sum / (neg_sum + 1e-12))


def _weighted_bce_ref(logit, truth, weights=(0.4, 0.6)):
    # Pure-JAX reference mirroring the PyTorch module.
    p = logit.reshape(-1).astype(jnp.float32)
    t = truth.reshape(-1).astype(jnp.float32)
    bce = -(t * jnp.maximum(jnp.log(p), -100.0)
            + (1.0 - t) * jnp.maximum(jnp.log(1.0 - p), -100.0))
    pos = (t > 0.5).astype(jnp.float32)
    neg = (t < 0.5).astype(jnp.float32)
    pos_w = jnp.sum(pos) + 1e-12
    neg_w = jnp.sum(neg) + 1e-12
    return jnp.sum(weights[0] * pos * bce / pos_w + weights[1] * neg * bce / neg_w)


if __name__ == "__main__":
    key = jax.random.PRNGKey(0)

    # (shape, soft_labels): exercise aligned single-block, multi-block with an
    # overhanging (slow-path) last block + 2-way split, and ragged-tail epilogue.
    checks = [
        ((2, 4, 16, 16), False),   # 2048 elems: aligned, single block
        ((4, 4, 72, 72), False),   # 82944 elems: 2 blocks, overhanging last block
        ((2, 3, 17, 13), True),    # 1326 elems: ragged tail + soft labels
    ]

    for idx, (shape, soft) in enumerate(checks):
        k1, k2 = jax.random.split(jax.random.fold_in(key, idx))
        logit = jax.nn.sigmoid(jax.random.normal(k1, shape, dtype=jnp.float32))
        if soft:
            truth = jax.random.uniform(k2, shape, dtype=jnp.float32)
        else:
            truth = (jax.random.uniform(k2, shape, dtype=jnp.float32) > 0.5).astype(jnp.float32)

        loss = jax.block_until_ready(weighted_bce(logit, truth, weights=(0.4, 0.6)))
        ref = jax.block_until_ready(_weighted_bce_ref(logit, truth, weights=(0.4, 0.6)))
        assert jnp.allclose(loss, ref, rtol=1e-4, atol=1e-5), (shape, loss, ref)

    print("KERNEL_OK")
</pallas_src>

<mosaic_0001>
module attributes {stable_mosaic.version = 11 : i64} {
  func.func @_wbce_kernel(%arg0: i32, %arg1: i32, %arg2: memref<16x128xf32, #tpu.memory_space<vmem>>, %arg3: memref<16x128xf32, #tpu.memory_space<vmem>>, %arg4: memref<1x4x8x128xf32, #tpu.memory_space<vmem>>, %arg5: memref<4x8x128xf32, #tpu.memory_space<vmem>>) attributes {dimension_semantics = [#tpu.dimension_semantics<parallel>, #tpu.dimension_semantics<arbitrary>], iteration_bounds = array<i64: 2, 1>, scalar_prefetch = 0 : i64, scratch_operands = 1 : i64, tpu.core_type = #tpu.core_type<tc>, window_params = [{transform_indices = @transform_0, window_bounds = array<i64: 16, 128>}, {transform_indices = @transform_1, window_bounds = array<i64: 16, 128>}, {transform_indices = @transform_2, window_bounds = array<i64: 1, 4, 8, 128>}]} {
    %c0_i32 = arith.constant 0 : i32
    %0 = arith.cmpi eq, %arg1, %c0_i32 : i32
    %1 = arith.extui %0 : i1 to i32
    %c0_i32_0 = arith.constant 0 : i32
    %2 = arith.cmpi ne, %1, %c0_i32_0 : i32
    scf.if %2 {
      %cst_19 = arith.constant 0.000000e+00 : f32
      %46 = vector.broadcast %cst_19 : f32 to vector<4x8x128xf32>
      %c0_20 = arith.constant 0 : index
      %c0_21 = arith.constant 0 : index
      %c0_22 = arith.constant 0 : index
      %47 = vector.load %arg5[%c0_20, %c0_21, %c0_22] : memref<4x8x128xf32, #tpu.memory_space<vmem>>, vector<4x8x128xf32>
      tpu.vector_store %arg5[%c0_20, %c0_21, %c0_22], %46 {strides = array<i32>} : memref<4x8x128xf32, #tpu.memory_space<vmem>>, vector<4x8x128xf32>,
    } else {
    }
    %c1_i32 = arith.constant 1 : i32
    %3 = arith.muli %arg0, %c1_i32 : i32
    %4 = arith.addi %3, %arg1 : i32
    %c16_i32 = arith.constant 16 : i32
    %5 = arith.muli %4, %c16_i32 : i32
    %c0_i32_1 = arith.constant 0 : i32
    %c1_i32_2 = arith.constant 1 : i32
    %6 = arith.muli %c0_i32_1, %c1_i32_2 : i32
    %c0_i32_3 = arith.constant 0 : i32
    %7 = arith.addi %c0_i32_3, %6 : i32
    %c16_i32_4 = arith.constant 16 : i32
    %8 = arith.muli %7, %c16_i32_4 : i32
    %9 = tpu.assume_multiple %8, 16 : i32
    %10 = arith.index_cast %9 : i32 to index
    %c0 = arith.constant 0 : index
    %11 = vector.load %arg2[%10, %c0] : memref<16x128xf32, #tpu.memory_space<vmem>>, vector<16x128xf32>
    %12 = arith.index_cast %9 : i32 to index
    %c0_5 = arith.constant 0 : index
    %13 = vector.load %arg3[%12, %c0_5] : memref<16x128xf32, #tpu.memory_space<vmem>>, vector<16x128xf32>
    %14 = math.log %11 : vector<16x128xf32>
    %cst = arith.constant -1.000000e+02 : f32
    %15 = vector.broadcast %cst : f32 to vector<16x128xf32>
    %16 = arith.maximumf %14, %15 : vector<16x128xf32>
    %cst_6 = arith.constant 1.000000e+00 : f32
    %17 = vector.broadcast %cst_6 : f32 to vector<16x128xf32>
    %18 = arith.subf %17, %11 : vector<16x128xf32>
    %19 = math.log %18 : vector<16x128xf32>
    %cst_7 = arith.constant -1.000000e+02 : f32
    %20 = vector.broadcast %cst_7 : f32 to vector<16x128xf32>
    %21 = arith.maximumf %19, %20 : vector<16x128xf32>
    %22 = arith.mulf %13, %16 : vector<16x128xf32>
    %cst_8 = arith.constant 1.000000e+00 : f32
    %23 = vector.broadcast %cst_8 : f32 to vector<16x128xf32>
    %24 = arith.subf %23, %13 : vector<16x128xf32>
    %25 = arith.mulf %24, %21 : vector<16x128xf32>
    %26 = arith.addf %22, %25 : vector<16x128xf32>
    %cst_9 = arith.constant 0.000000e+00 : f32
    %27 = vector.broadcast %cst_9 : f32 to vector<16x128xf32>
    %28 = arith.subf %27, %26 : vector<16x128xf32>
    %cst_10 = arith.constant 5.000000e-01 : f32
    %29 = vector.broadcast %cst_10 : f32 to vector<16x128xf32>
    %30 = arith.cmpf ogt, %13, %29 : vector<16x128xf32>
    %cst_11 = arith.constant 5.000000e-01 : f32
    %31 = vector.broadcast %cst_11 : f32 to vector<16x128xf32>
    %32 = arith.cmpf olt, %13, %31 : vector<16x128xf32>
    %c16_i32_12 = arith.constant 16 : i32
    %33 = arith.muli %7, %c16_i32_12 : i32
    %34 = arith.addi %5, %33 : i32
    %c16_i32_13 = arith.constant 16 : i32
    %35 = arith.addi %34, %c16_i32_13 : i32
    %c128_i32 = arith.constant 128 : i32
    %36 = arith.muli %35, %c128_i32 : i32
    %c2048_i32 = arith.constant 2048 : i32
    %37 = arith.cmpi sle, %36, %c2048_i32 : i32
    %38 = arith.extui %37 : i1 to i32
    %c0_i32_14 = arith.constant 0 : i32
    %39 = arith.cmpi ne, %38, %c0_i32_14 : i32
    scf.if %39 {
      %c0_19 = arith.constant 0 : index
      %c0_20 = arith.constant 0 : index
      %c0_21 = arith.constant 0 : index
      %46 = vector.load %arg5[%c0_19, %c0_20, %c0_21] : memref<4x8x128xf32, #tpu.memory_space<vmem>>, vector<1x8x128xf32>
      %47 = vector.shape_cast %46 : vector<1x8x128xf32> to vector<8x128xf32>
      %cst_22 = arith.constant 1.000000e+00 : f32
      %cst_23 = arith.constant 0.000000e+00 : f32
      %48 = vector.broadcast %cst_22 : f32 to vector<16x128xf32>
      %49 = vector.broadcast %cst_23 : f32 to vector<16x128xf32>
      %50 = arith.select %30, %48, %49 : vector<16x128xi1>, vector<16x128xf32>
      %51 = vector.shape_cast %50 : vector<16x128xf32> to vector<2x8x128xf32>
      %cst_24 = arith.constant dense<0.000000e+00> : vector<8x128xf32>
      %52 = vector.multi_reduction <add>, %51, %cst_24 [0] : vector<2x8x128xf32> to vector<8x128xf32>
      %53 = arith.addf %47, %52 : vector<8x128xf32>
      %c0_25 = arith.constant 0 : index
      %c0_26 = arith.constant 0 : index
      %c0_27 = arith.constant 0 : index
      %54 = vector.load %arg5[%c0_25, %c0_26, %c0_27] : memref<4x8x128xf32, #tpu.memory_space<vmem>>, vector<1x8x128xf32>
      %55 = vector.shape_cast %54 : vector<1x8x128xf32> to vector<8x128xf32>
      %56 = vector.shape_cast %53 : vector<8x128xf32> to vector<1x8x128xf32>
      tpu.vector_store %arg5[%c0_25, %c0_26, %c0_27], %56 {strides = array<i32>} : memref<4x8x128xf32, #tpu.memory_space<vmem>>, vector<1x8x128xf32>,
      %c1 = arith.constant 1 : index
      %c0_28 = arith.constant 0 : index
      %c0_29 = arith.constant 0 : index
      %57 = vector.load %arg5[%c1, %c0_28, %c0_29] : memref<4x8x128xf32, #tpu.memory_space<vmem>>, vector<1x8x128xf32>
      %58 = vector.shape_cast %57 : vector<1x8x128xf32> to vector<8x128xf32>
      %cst_30 = arith.constant 1.000000e+00 : f32
      %cst_31 = arith.constant 0.000000e+00 : f32
      %59 = vector.broadcast %cst_30 : f32 to vector<16x128xf32>
      %60 = vector.broadcast %cst_31 : f32 to vector<16x128xf32>
      %61 = arith.select %32, %59, %60 : vector<16x128xi1>, vector<16x128xf32>
      %62 = vector.shape_cast %61 : vector<16x128xf32> to vector<2x8x128xf32>
      %cst_32 = arith.constant dense<0.000000e+00> : vector<8x128xf32>
      %63 = vector.multi_reduction <add>, %62, %cst_32 [0] : vector<2x8x128xf32> to vector<8x128xf32>
      %64 = arith.addf %58, %63 : vector<8x128xf32>
      %c1_33 = arith.constant 1 : index
      %c0_34 = arith.constant 0 : index
      %c0_35 = arith.constant 0 : index
      %65 = vector.load %arg5[%c1_33, %c0_34, %c0_35] : memref<4x8x128xf32, #tpu.memory_space<vmem>>, vector<1x8x128xf32>
      %66 = vector.shape_cast %65 : vector<1x8x128xf32> to vector<8x128xf32>
      %67 = vector.shape_cast %64 : vector<8x128xf32> to vector<1x8x128xf32>
      tpu.vector_store %arg5[%c1_33, %c0_34, %c0_35], %67 {strides = array<i32>} : memref<4x8x128xf32, #tpu.memory_space<vmem>>, vector<1x8x128xf32>,
      %c2 = arith.constant 2 : index
      %c0_36 = arith.constant 0 : index
      %c0_37 = arith.constant 0 : index
      %68 = vector.load %arg5[%c2, %c0_36, %c0_37] : memref<4x8x128xf32, #tpu.memory_space<vmem>>, vector<1x8x128xf32>
      %69 = vector.shape_cast %68 : vector<1x8x128xf32> to vector<8x128xf32>
      %cst_38 = arith.constant 0.000000e+00 : f32
      %70 = vector.broadcast %cst_38 : f32 to vector<16x128xf32>
      %71 = arith.select %30, %28, %70 : vector<16x128xi1>, vector<16x128xf32>
      %72 = vector.shape_cast %71 : vector<16x128xf32> to vector<2x8x128xf32>
      %cst_39 = arith.constant dense<0.000000e+00> : vector<8x128xf32>
      %73 = vector.multi_reduction <add>, %72, %cst_39 [0] : vector<2x8x128xf32> to vector<8x128xf32>
      %74 = arith.addf %69, %73 : vector<8x128xf32>
      %c2_40 = arith.constant 2 : index
      %c0_41 = arith.constant 0 : index
      %c0_42 = arith.constant 0 : index
      %75 = vector.load %arg5[%c2_40, %c0_41, %c0_42] : memref<4x8x128xf32, #tpu.memory_space<vmem>>, vector<1x8x128xf32>
      %76 = vector.shape_cast %75 : vector<1x8x128xf32> to vector<8x128xf32>
      %77 = vector.shape_cast %74 : vector<8x128xf32> to vector<1x8x128xf32>
      tpu.vector_store %arg5[%c2_40, %c0_41, %c0_42], %77 {strides = array<i32>} : memref<4x8x128xf32, #tpu.memory_space<vmem>>, vector<1x8x128xf32>,
      %c3 = arith.constant 3 : index
      %c0_43 = arith.constant 0 : index
      %c0_44 = arith.constant 0 : index
      %78 = vector.load %arg5[%c3, %c0_43, %c0_44] : memref<4x8x128xf32, #tpu.memory_space<vmem>>, vector<1x8x128xf32>
      %79 = vector.shape_cast %78 : vector<1x8x128xf32> to vector<8x128xf32>
      %cst_45 = arith.constant 0.000000e+00 : f32
      %80 = vector.broadcast %cst_45 : f32 to vector<16x128xf32>
      %81 = arith.select %32, %28, %80 : vector<16x128xi1>, vector<16x128xf32>
      %82 = vector.shape_cast %81 : vector<16x128xf32> to vector<2x8x128xf32>
      %cst_46 = arith.constant dense<0.000000e+00> : vector<8x128xf32>
      %83 = vector.multi_reduction <add>, %82, %cst_46 [0] : vector<2x8x128xf32> to vector<8x128xf32>
      %84 = arith.addf %79, %83 : vector<8x128xf32>
      %c3_47 = arith.constant 3 : index
      %c0_48 = arith.constant 0 : index
      %c0_49 = arith.constant 0 : index
      %85 = vector.load %arg5[%c3_47, %c0_48, %c0_49] : memref<4x8x128xf32, #tpu.memory_space<vmem>>, vector<1x8x128xf32>
      %86 = vector.shape_cast %85 : vector<1x8x128xf32> to vector<8x128xf32>
      %87 = vector.shape_cast %84 : vector<8x128xf32> to vector<1x8x128xf32>
      tpu.vector_store %arg5[%c3_47, %c0_48, %c0_49], %87 {strides = array<i32>} : memref<4x8x128xf32, #tpu.memory_space<vmem>>, vector<1x8x128xf32>,
    } else {
    }
    %true = arith.constant true
    %40 = arith.xori %37, %true : i1
    %41 = arith.extui %40 : i1 to i32
    %c0_i32_15 = arith.constant 0 : i32
    %42 = arith.cmpi ne, %41, %c0_i32_15 : i32
    scf.if %42 {
      %46 = tpu.iota {dimensions = array<i32: 0>} : vector<16x128xi32>
      %47 = tpu.iota {dimensions = array<i32: 1>} : vector<16x128xi32>
      %48 = vector.broadcast %34 : i32 to vector<16x128xi32>
      %49 = arith.addi %48, %46 : vector<16x128xi32>
      %c128_i32_19 = arith.constant 128 : i32
      %50 = vector.broadcast %c128_i32_19 : i32 to vector<16x128xi32>
      %51 = arith.muli %49, %50 : vector<16x128xi32>
      %52 = arith.addi %51, %47 : vector<16x128xi32>
      %c2048_i32_20 = arith.constant 2048 : i32
      %53 = vector.broadcast %c2048_i32_20 : i32 to vector<16x128xi32>
      %54 = arith.cmpi slt, %52, %53 : vector<16x128xi32>
      %55 = arith.andi %54, %30 : vector<16x128xi1>
      %56 = arith.andi %54, %32 : vector<16x128xi1>
      %c0_21 = arith.constant 0 : index
      %c0_22 = arith.constant 0 : index
      %c0_23 = arith.constant 0 : index
      %57 = vector.load %arg5[%c0_21, %c0_22, %c0_23] : memref<4x8x128xf32, #tpu.memory_space<vmem>>, vector<1x8x128xf32>
      %58 = vector.shape_cast %57 : vector<1x8x128xf32> to vector<8x128xf32>
      %cst_24 = arith.constant 1.000000e+00 : f32
      %cst_25 = arith.constant 0.000000e+00 : f32
      %59 = vector.broadcast %cst_24 : f32 to vector<16x128xf32>
      %60 = vector.broadcast %cst_25 : f32 to vector<16x128xf32>
      %61 = arith.select %55, %59, %60 : vector<16x128xi1>, vector<16x128xf32>
      %62 = vector.shape_cast %61 : vector<16x128xf32> to vector<2x8x128xf32>
      %cst_26 = arith.constant dense<0.000000e+00> : vector<8x128xf32>
      %63 = vector.multi_reduction <add>, %62, %cst_26 [0] : vector<2x8x128xf32> to vector<8x128xf32>
      %64 = arith.addf %58, %63 : vector<8x128xf32>
      %c0_27 = arith.constant 0 : index
      %c0_28 = arith.constant 0 : index
      %c0_29 = arith.constant 0 : index
      %65 = vector.load %arg5[%c0_27, %c0_28, %c0_29] : memref<4x8x128xf32, #tpu.memory_space<vmem>>, vector<1x8x128xf32>
      %66 = vector.shape_cast %65 : vector<1x8x128xf32> to vector<8x128xf32>
      %67 = vector.shape_cast %64 : vector<8x128xf32> to vector<1x8x128xf32>
      tpu.vector_store %arg5[%c0_27, %c0_28, %c0_29], %67 {strides = array<i32>} : memref<4x8x128xf32, #tpu.memory_space<vmem>>, vector<1x8x128xf32>,
      %c1 = arith.constant 1 : index
      %c0_30 = arith.constant 0 : index
      %c0_31 = arith.constant 0 : index
      %68 = vector.load %arg5[%c1, %c0_30, %c0_31] : memref<4x8x128xf32, #tpu.memory_space<vmem>>, vector<1x8x128xf32>
      %69 = vector.shape_cast %68 : vector<1x8x128xf32> to vector<8x128xf32>
      %cst_32 = arith.constant 1.000000e+00 : f32
      %cst_33 = arith.constant 0.000000e+00 : f32
      %70 = vector.broadcast %cst_32 : f32 to vector<16x128xf32>
      %71 = vector.broadcast %cst_33 : f32 to vector<16x128xf32>
      %72 = arith.select %56, %70, %71 : vector<16x128xi1>, vector<16x128xf32>
      %73 = vector.shape_cast %72 : vector<16x128xf32> to vector<2x8x128xf32>
      %cst_34 = arith.constant dense<0.000000e+00> : vector<8x128xf32>
      %74 = vector.multi_reduction <add>, %73, %cst_34 [0] : vector<2x8x128xf32> to vector<8x128xf32>
      %75 = arith.addf %69, %74 : vector<8x128xf32>
      %c1_35 = arith.constant 1 : index
      %c0_36 = arith.constant 0 : index
      %c0_37 = arith.constant 0 : index
      %76 = vector.load %arg5[%c1_35, %c0_36, %c0_37] : memref<4x8x128xf32, #tpu.memory_space<vmem>>, vector<1x8x128xf32>
      %77 = vector.shape_cast %76 : vector<1x8x128xf32> to vector<8x128xf32>
      %78 = vector.shape_cast %75 : vector<8x128xf32> to vector<1x8x128xf32>
      tpu.vector_store %arg5[%c1_35, %c0_36, %c0_37], %78 {strides = array<i32>} : memref<4x8x128xf32, #tpu.memory_space<vmem>>, vector<1x8x128xf32>,
      %c2 = arith.constant 2 : index
      %c0_38 = arith.constant 0 : index
      %c0_39 = arith.constant 0 : index
      %79 = vector.load %arg5[%c2, %c0_38, %c0_39] : memref<4x8x128xf32, #tpu.memory_space<vmem>>, vector<1x8x128xf32>
      %80 = vector.shape_cast %79 : vector<1x8x128xf32> to vector<8x128xf32>
      %cst_40 = arith.constant 0.000000e+00 : f32
      %81 = vector.broadcast %cst_40 : f32 to vector<16x128xf32>
      %82 = arith.select %55, %28, %81 : vector<16x128xi1>, vector<16x128xf32>
      %83 = vector.shape_cast %82 : vector<16x128xf32> to vector<2x8x128xf32>
      %cst_41 = arith.constant dense<0.000000e+00> : vector<8x128xf32>
      %84 = vector.multi_reduction <add>, %83, %cst_41 [0] : vector<2x8x128xf32> to vector<8x128xf32>
      %85 = arith.addf %80, %84 : vector<8x128xf32>
      %c2_42 = arith.constant 2 : index
      %c0_43 = arith.constant 0 : index
      %c0_44 = arith.constant 0 : index
      %86 = vector.load %arg5[%c2_42, %c0_43, %c0_44] : memref<4x8x128xf32, #tpu.memory_space<vmem>>, vector<1x8x128xf32>
      %87 = vector.shape_cast %86 : vector<1x8x128xf32> to vector<8x128xf32>
      %88 = vector.shape_cast %85 : vector<8x128xf32> to vector<1x8x128xf32>
      tpu.vector_store %arg5[%c2_42, %c0_43, %c0_44], %88 {strides = array<i32>} : memref<4x8x128xf32, #tpu.memory_space<vmem>>, vector<1x8x128xf32>,
      %c3 = arith.constant 3 : index
      %c0_45 = arith.constant 0 : index
      %c0_46 = arith.constant 0 : index
      %89 = vector.load %arg5[%c3, %c0_45, %c0_46] : memref<4x8x128xf32, #tpu.memory_space<vmem>>, vector<1x8x128xf32>
      %90 = vector.shape_cast %89 : vector<1x8x128xf32> to vector<8x128xf32>
      %cst_47 = arith.constant 0.000000e+00 : f32
      %91 = vector.broadcast %cst_47 : f32 to vector<16x128xf32>
      %92 = arith.select %56, %28, %91 : vector<16x128xi1>, vector<16x128xf32>
      %93 = vector.shape_cast %92 : vector<16x128xf32> to vector<2x8x128xf32>
      %cst_48 = arith.constant dense<0.000000e+00> : vector<8x128xf32>
      %94 = vector.multi_reduction <add>, %93, %cst_48 [0] : vector<2x8x128xf32> to vector<8x128xf32>
      %95 = arith.addf %90, %94 : vector<8x128xf32>
      %c3_49 = arith.constant 3 : index
      %c0_50 = arith.constant 0 : index
      %c0_51 = arith.constant 0 : index
      %96 = vector.load %arg5[%c3_49, %c0_50, %c0_51] : memref<4x8x128xf32, #tpu.memory_space<vmem>>, vector<1x8x128xf32>
      %97 = vector.shape_cast %96 : vector<1x8x128xf32> to vector<8x128xf32>
      %98 = vector.shape_cast %95 : vector<8x128xf32> to vector<1x8x128xf32>
      tpu.vector_store %arg5[%c3_49, %c0_50, %c0_51], %98 {strides = array<i32>} : memref<4x8x128xf32, #tpu.memory_space<vmem>>, vector<1x8x128xf32>,
    } else {
    }
    %c1_i32_16 = arith.constant 1 : i32
    %c0_i32_17 = arith.constant 0 : i32
    %43 = arith.cmpi eq, %arg1, %c0_i32_17 : i32
    %44 = arith.extui %43 : i1 to i32
    %c0_i32_18 = arith.constant 0 : i32
    %45 = arith.cmpi ne, %44, %c0_i32_18 : i32
    scf.if %45 {
      %c0_19 = arith.constant 0 : index
      %c0_20 = arith.constant 0 : index
      %c0_21 = arith.constant 0 : index
      %46 = vector.load %arg5[%c0_19, %c0_20, %c0_21] : memref<4x8x128xf32, #tpu.memory_space<vmem>>, vector<4x8x128xf32>
      %47 = vector.shape_cast %46 : vector<4x8x128xf32> to vector<1x4x8x128xf32>
      %c0_22 = arith.constant 0 : index
      %c0_23 = arith.constant 0 : index
      %c0_24 = arith.constant 0 : index
      %c0_25 = arith.constant 0 : index
      %48 = vector.load %arg4[%c0_22, %c0_23, %c0_24, %c0_25] : memref<1x4x8x128xf32, #tpu.memory_space<vmem>>, vector<1x4x8x128xf32>
      tpu.vector_store %arg4[%c0_22, %c0_23, %c0_24, %c0_25], %47 {strides = array<i32>} : memref<1x4x8x128xf32, #tpu.memory_space<vmem>>, vector<1x4x8x128xf32>,
    } else {
    }
    return
  }
  func.func @transform_0(%arg0: i32, %arg1: i32) -> (i32, i32) {
    %c1_i32 = arith.constant 1 : i32
    %0 = arith.muli %arg0, %c1_i32 : i32
    %1 = arith.addi %0, %arg1 : i32
    %c0_i32 = arith.constant 0 : i32
    %2 = arith.minsi %1, %c0_i32 : i32
    %c0_i32_0 = arith.constant 0 : i32
    %c0_i32_1 = arith.constant 0 : i32
    return %2, %c0_i32_0 : i32, i32
  }
  func.func @transform_1(%arg0: i32, %arg1: i32) -> (i32, i32) {
    %c1_i32 = arith.constant 1 : i32
    %0 = arith.muli %arg0, %c1_i32 : i32
    %1 = arith.addi %0, %arg1 : i32
    %c0_i32 = arith.constant 0 : i32
    %2 = arith.minsi %1, %c0_i32 : i32
    %c0_i32_0 = arith.constant 0 : i32
    %c0_i32_1 = arith.constant 0 : i32
    return %2, %c0_i32_0 : i32, i32
  }
  func.func @transform_2(%arg0: i32, %arg1: i32) -> (i32, i32, i32, i32) {
    %c0_i32 = arith.constant 0 : i32
    %c0_i32_0 = arith.constant 0 : i32
    %c0_i32_1 = arith.constant 0 : i32
    %c0_i32_2 = arith.constant 0 : i32
    return %arg0, %c0_i32, %c0_i32_0, %c0_i32_1 : i32, i32, i32, i32
  }
}

</mosaic_0001>

<llo_original>
// kernel: tpu_custom_call.1
$region0: #{tpu_custom_call.1}
  #allocation0 [shape = 'u32[]', space=smem, size = 0x4, offset = 0x4, fixed_abs, tag = 'smem constant byte address 0x4 - core index']
  #allocation1 [shape = 'u32[144,128]{1,0:T(1,128)}', space=vmem, size = 0x12000, scoped, tag = 'internal scratch']
  #allocation2 [shape = 'f32[4,8,128]{2,1,0:T(8,128)}', space=vmem, size = 0x4000, scoped, tag = 'scratch operand']
  %s0 = inlined_call_operand.hbm [shape: f32[16,128], index: 0, kind: input, shape index: {}]
  %s1 = inlined_call_operand.hbm [shape: f32[16,128], index: 1, kind: input, shape index: {}]
  %s2 = inlined_call_operand.hbm [shape: f32[2,4,8,128], index: 2, kind: output, shape index: {}]
  %s3 = sld [smem:[#allocation0]]
  $region65: #{tpu_custom_call.1} parent=0
    _
  %s5 = ssub.s32 1, %s3
  %s6 = scalar_select 0, %s5, %s3
  $region1: #{tpu_custom_call.1} parent=0
    #allocation3 [shape = 'u8[16384]{0}', space=vmem, size = 0x4000, scoped, tag = 'input window, operand 0']
    #allocation4 [shape = 's32[2]{0}', space=sflag, size = 0x8, scoped, tag = 'scoped memory for tpu_custom_call.1']
    #allocation5 [shape = 's32[2]{0}', space=sflag, size = 0x8, scoped, tag = 'scoped memory for tpu_custom_call.1']
    #allocation6 [shape = 'u8[16384]{0}', space=vmem, size = 0x4000, scoped, tag = 'input window, operand 1']
    #allocation7 [shape = 's32[2]{0}', space=sflag, size = 0x8, scoped, tag = 'scoped memory for tpu_custom_call.1']
    #allocation8 [shape = 'u8[32768]{0}', space=vmem, size = 0x8000, scoped, tag = 'output window, operand 0']
    %7 = vsyncpa [#allocation4], 0
    %s8 = scalar_lea.sflag [#allocation4], 1
    %9 = vsyncpa %s8, 0
    %10 = vsyncpa [#allocation7], 0
    %s11 = scalar_lea.sflag [#allocation7], 1
    %12 = vsyncpa %s11, 0
    %13 = vsyncpa [#allocation5], 0
    %s14 = scalar_lea.sflag [#allocation5], 1
    %15 = vsyncpa %s14, 0
    loop: start=0, step=1, limit=4
    $region2: #{tpu_custom_call.1} parent=1 // loop_pre_header
      _
    $region3: #{tpu_custom_call.1} parent=1 // loop_header
      %s17 = sphi 0, %s21
      %p18 = scmp.ge.s32.totalorder %s17, 4
      %s24 = sphi 0, %s36
      %s25 = sphi 0, %s32
      %s26 = sphi 0, %s24
      %s27 = sphi 0, %s25
      %s28 = sphi 0, %s26
      %s29 = sphi 0, %s27
      %s45 = sphi 0, %s47
      %s48 = sphi 0, %s45
      %s49 = sphi 0, %s48
      %s65 = sphi 0, %s49
      %s77 = sphi 0, %s79
      %s80 = sphi 0, %s77
      %s81 = sphi 0, %s80
      %s97 = sphi 0, %s81
      %s103 = sphi 0, %s105
      %s106 = sphi 0, %s103
      %s107 = sphi 0, %s106
      %s123 = sphi 0, %s107
    $region4: #{tpu_custom_call.1} parent=1 // loop_header_branch
      %20 = sbr.rel (%p18) target = $region8
    $region5: #{tpu_custom_call.1} parent=1 // loop_body
      %s22 = ssub.s32 %s17, 1
      %s23 = ssub.s32 %s17, 2
      %s30 = sadd.s32 1, %s25
      %p31 = scmp.ge.s32.totalorder %s30, 1
      %s32 = scalar_select %p31, 0, %s30
      %s33 = sadd.s32 1, %s24
      %s34 = scalar_select %p31, %s33, %s24
      %p35 = scmp.ge.s32.totalorder %s34, 2
      %s36 = scalar_select %p35, 0, %s34
      %s37 = sadd.s32 %s24, %s25
      %p38 = scmp.lt.s32.totalorder %s37, 0
      %s39 = scalar_select %p38, %s37, 0
      %s40 = sadd.s32 %s36, %s32
      %p41 = scmp.lt.s32.totalorder %s40, 0
      %s42 = scalar_select %p41, %s40, 0
      %s43 = ssub.s32 %s39, %s42
      %p44 = scmp.eq.s32.totalorder %s43, 0
      %s46 = sadd.s32 %s45, 1
      %s47 = scalar_select %p44, %s45, %s46
      %p50 = pneg %p44
      %p51 = scmp.eq.s32.totalorder %s17, 1
      %p52 = por %p50, %p51
      %p53 = scmp.ne.s32.totalorder %s45, %s48
      %p54 = scmp.eq.s32.totalorder %s17, 0
      %p55 = por %p53, %p54
      %p56 = scmp.ne.s32.totalorder %s45, %s48
      %p57 = scmp.eq.s32.totalorder %s22, 1
      %p58 = por %p56, %p57
      %p59 = scmp.ne.s32.totalorder %s48, %s49
      %p60 = scmp.eq.s32.totalorder %s22, 0
      %p61 = por %p59, %p60
      %p62 = scmp.ne.s32.totalorder %s48, %s49
      %p63 = scmp.eq.s32.totalorder %s23, 1
      %p64 = por %p62, %p63
      %p66 = scmp.ne.s32.totalorder %s49, %s65
      %p67 = scmp.eq.s32.totalorder %s23, 0
      %p68 = por %p66, %p67
      %s69 = sadd.s32 %s24, %s25
      %p70 = scmp.lt.s32.totalorder %s69, 0
      %s71 = scalar_select %p70, %s69, 0
      %s72 = sadd.s32 %s36, %s32
      %p73 = scmp.lt.s32.totalorder %s72, 0
      %s74 = scalar_select %p73, %s72, 0
      %s75 = ssub.s32 %s71, %s74
      %p76 = scmp.eq.s32.totalorder %s75, 0
      %s78 = sadd.s32 %s77, 1
      %s79 = scalar_select %p76, %s77, %s78
      %p82 = pneg %p76
      %p83 = scmp.eq.s32.totalorder %s17, 1
      %p84 = por %p82, %p83
      %p85 = scmp.ne.s32.totalorder %s77, %s80
      %p86 = scmp.eq.s32.totalorder %s17, 0
      %p87 = por %p85, %p86
      %p88 = scmp.ne.s32.totalorder %s77, %s80
      %p89 = scmp.eq.s32.totalorder %s22, 1
      %p90 = por %p88, %p89
      %p91 = scmp.ne.s32.totalorder %s80, %s81
      %p92 = scmp.eq.s32.totalorder %s22, 0
      %p93 = por %p91, %p92
      %p94 = scmp.ne.s32.totalorder %s80, %s81
      %p95 = scmp.eq.s32.totalorder %s23, 1
      %p96 = por %p94, %p95
      %p98 = scmp.ne.s32.totalorder %s81, %s97
      %p99 = scmp.eq.s32.totalorder %s23, 0
      %p100 = por %p98, %p99
      %s101 = ssub.s32 %s24, %s36
      %p102 = scmp.eq.s32.totalorder %s101, 0
      %s104 = sadd.s32 %s103, 1
      %s105 = scalar_select %p102, %s103, %s104
      %p108 = pneg %p102
      %p109 = scmp.eq.s32.totalorder %s17, 1
      %p110 = por %p108, %p109
      %p111 = scmp.ne.s32.totalorder %s103, %s106
      %p112 = scmp.eq.s32.totalorder %s17, 0
      %p113 = por %p111, %p112
      %p114 = scmp.ne.s32.totalorder %s103, %s106
      %p115 = scmp.eq.s32.totalorder %s22, 1
      %p116 = por %p114, %p115
      %p117 = scmp.ne.s32.totalorder %s106, %s107
      %p118 = scmp.eq.s32.totalorder %s22, 0
      %p119 = por %p117, %p118
      %p120 = scmp.ne.s32.totalorder %s106, %s107
      %p121 = scmp.eq.s32.totalorder %s23, 1
      %p122 = por %p120, %p121
      %p124 = scmp.ne.s32.totalorder %s107, %s123
      %p125 = scmp.eq.s32.totalorder %s23, 0
      %p126 = por %p124, %p125
      %p127 = scmp.le.s32.totalorder 1, %s17
      %p128 = scmp.lt.s32.totalorder %s17, 3
      %p129 = pnand %p127, %p128
      %p130 = pneg %p129
      // Predicated region
      $region9: #{tpu_custom_call.1} parent=5 // pred_check
        _
      $region10: #{tpu_custom_call.1} parent=5 // pred_check_branch
        %132 = sbr.rel (%p129) target = $region12
      $region11: #{tpu_custom_call.1} parent=5 // pred_region
        %s133 = ssub.s32 %s17, 1
      $region12: #{tpu_custom_call.1} parent=5 // pred_fallthru
        _
      %p134 = scmp.lt.s32.totalorder %s17, 2
      // Predicated region
      $region13: #{tpu_custom_call.1} parent=5 // pred_check
        %p135 = pneg %p134
      $region14: #{tpu_custom_call.1} parent=5 // pred_check_branch
        %137 = sbr.rel (%p135) target = $region16
      $region15: #{tpu_custom_call.1} parent=5 // pred_region
        // Predicated region
        $region17: #{tpu_custom_call.1} parent=15 // pred_check
          %p138 = pneg %p55
        $region18: #{tpu_custom_call.1} parent=15 // pred_check_branch
          %140 = sbr.rel (%p138) target = $region20
        $region19: #{tpu_custom_call.1} parent=15 // pred_region
          %s141 = sand.u32 %s45, 1
          %s142 = scalar_lea.sflag [#allocation4], %s141
          %s143 = sand.u32 %s45, 1
          %s144 = smul.addr %s143, 16
          %s145 = scalar_lea.vmem [#allocation3], %s144
          %s146 = sadd.s32 %s24, %s25
          %p147 = scmp.lt.s32.totalorder %s146, 0
          %s148 = scalar_select %p147, %s146, 0
          %s149 = smul.u32 2, %s148
          %s151 = ssub.s32 256, 256
          %152 = vsyncadd %s142, %s151
          %s153 = smul.addr %s149, 128
          %s154 = scalar_lea.hbm %s0, %s153
          %s155 = sshll.u32 %s145, 4
          %s156 = int_to_ptr.vmem [resolvable:$true] %s155
          %161 = dma.hbm_to_vmem [thread:$0]  %s154, 256, %s156, %s142, 128, 128, 8
        $region20: #{tpu_custom_call.1} parent=15 // pred_fallthru
          _
        // Predicated region
        $region21: #{tpu_custom_call.1} parent=15 // pred_check
          %p162 = pneg %p87
        $region22: #{tpu_custom_call.1} parent=15 // pred_check_branch
          %164 = sbr.rel (%p162) target = $region24
        $region23: #{tpu_custom_call.1} parent=15 // pred_region
          %s165 = sand.u32 %s77, 1
          %s166 = scalar_lea.sflag [#allocation7], %s165
          %s167 = sand.u32 %s77, 1
          %s168 = smul.addr %s167, 16
          %s169 = scalar_lea.vmem [#allocation6], %s168
          %s170 = sadd.s32 %s24, %s25
          %p171 = scmp.lt.s32.totalorder %s170, 0
          %s172 = scalar_select %p171, %s170, 0
          %s173 = smul.u32 2, %s172
          %s175 = ssub.s32 256, 256
          %176 = vsyncadd %s166, %s175
          %s177 = smul.addr %s173, 128
          %s178 = scalar_lea.hbm %s1, %s177
          %s179 = sshll.u32 %s169, 4
          %s180 = int_to_ptr.vmem [resolvable:$true] %s179
          %185 = dma.hbm_to_vmem [thread:$0]  %s178, 256, %s180, %s166, 128, 128, 8
        $region24: #{tpu_custom_call.1} parent=15 // pred_fallthru
          _
      $region16: #{tpu_custom_call.1} parent=5 // pred_fallthru
        _
      %p186 = scmp.le.s32.totalorder 1, %s17
      %p187 = scmp.lt.s32.totalorder %s17, 3
      %p188 = pnand %p186, %p187
      %p189 = pneg %p188
      // Predicated region
      $region25: #{tpu_custom_call.1} parent=5 // pred_check
        _
      $region26: #{tpu_custom_call.1} parent=5 // pred_check_branch
        %191 = sbr.rel (%p188) target = $region28
      $region27: #{tpu_custom_call.1} parent=5 // pred_region
        %s192 = ssub.s32 %s17, 1
        %s193 = sand.u32 %s48, 1
        %s194 = scalar_lea.sflag [#allocation4], %s193
        %s195 = sand.u32 %s48, 1
        %s196 = smul.addr %s195, 16
        %s197 = scalar_lea.vmem [#allocation3], %s196
        // Predicated region
        $region29: #{tpu_custom_call.1} parent=27 // pred_check
          %p198 = pneg %p61
        $region30: #{tpu_custom_call.1} parent=27 // pred_check_branch
          %200 = sbr.rel (%p198) target = $region32
        $region31: #{tpu_custom_call.1} parent=27 // pred_region
          %201 = dma.done %s194, 256
        $region32: #{tpu_custom_call.1} parent=27 // pred_fallthru
          _
        %s202 = sand.u32 %s80, 1
        %s203 = scalar_lea.sflag [#allocation7], %s202
        %s204 = sand.u32 %s80, 1
        %s205 = smul.addr %s204, 16
        %s206 = scalar_lea.vmem [#allocation6], %s205
        // Predicated region
        $region33: #{tpu_custom_call.1} parent=27 // pred_check
          %p207 = pneg %p93
        $region34: #{tpu_custom_call.1} parent=27 // pred_check_branch
          %209 = sbr.rel (%p207) target = $region36
        $region35: #{tpu_custom_call.1} parent=27 // pred_region
          %210 = dma.done %s203, 256
        $region36: #{tpu_custom_call.1} parent=27 // pred_fallthru
          _
        %s211 = sand.u32 %s48, 1
        %s212 = scalar_lea.sflag [#allocation4], %s211
        %s213 = sand.u32 %s48, 1
        %s214 = smul.addr %s213, 16
        %s215 = scalar_lea.vmem [#allocation3], %s214
        %p216 = pneg %p61
        %p217 = pneg %p58
        %s218 = sand.u32 %s80, 1
        %s219 = scalar_lea.sflag [#allocation7], %s218
        %s220 = sand.u32 %s80, 1
        %s221 = smul.addr %s220, 16
        %s222 = scalar_lea.vmem [#allocation6], %s221
        %p223 = pneg %p93
        %p224 = pneg %p90
        %p225 = pneg %p119
        %p226 = pneg %p116
        %s227 = sand.u32 %s106, 1
        %s228 = scalar_lea.sflag [#allocation5], %s227
        %s229 = sand.u32 %s106, 1
        %s230 = smul.addr %s229, 32
        %s231 = scalar_lea.vmem [#allocation8], %s230
        %s232 = sadd.s32 %s26, %s27
        %p233 = scmp.lt.s32.totalorder %s232, 0
        %s234 = scalar_select %p233, %s232, 0
        %s235 = smul.u32 2, %s234
        %s236 = sadd.s32 %s26, %s27
        %p237 = scmp.lt.s32.totalorder %s236, 0
        %s238 = scalar_select %p237, %s236, 0
        %s239 = smul.u32 2, %s238
        %p240 = scmp.eq.s32.totalorder %s27, 0
        // Predicated region
        $region37: #{tpu_custom_call.1} parent=27 // pred_check
          %p241 = pneg %p240
        $region38: #{tpu_custom_call.1} parent=27 // pred_check_branch
          %243 = sbr.rel (%p241) target = $region40
        $region39: #{tpu_custom_call.1} parent=27 // pred_region
          %244 = vst [vmem:[#allocation2] sm:$0xff] 0.0
          %245 = vst [vmem:[#allocation2 + $0x8] sm:$0xff] 0.0
          %246 = vst [vmem:[#allocation2 + $0x10] sm:$0xff] 0.0
          %247 = vst [vmem:[#allocation2 + $0x18] sm:$0xff] 0.0
        $region40: #{tpu_custom_call.1} parent=27 // pred_fallthru
          _
        %s248 = sadd.s32 %s26, %s27
        %s249 = smul.u32 %s248, 16
        %v250 = vld [vmem:[%s197] sm:$0xff]
        %v251 = vld [vmem:[%s197 + $0x8] sm:$0xff]
        %v252 = vld [vmem:[%s206] sm:$0xff]
        %v253 = vld [vmem:[%s206 + $0x8] sm:$0xff]
        %v254 = vlog2.pop %v250
        %v255 = vmul.f32 %v254, 0.6931472
        %v256 = vlog2.pop %v251
        %v257 = vmul.f32 %v256, 0.6931472
        %v258 = vmax.f32 %v255, -100.0
        %v259 = vmax.f32 %v257, -100.0
        %v260 = vsub.f32 1.0, %v250
        %v261 = vsub.f32 1.0, %v251
        %v262 = vlog2.pop %v260
        %v263 = vmul.f32 %v262, 0.6931472
        %v264 = vlog2.pop %v261
        %v265 = vmul.f32 %v264, 0.6931472
        %v266 = vmax.f32 %v263, -100.0
        %v267 = vmax.f32 %v265, -100.0
        %v268 = vmul.f32 %v252, %v258
        %v269 = vmul.f32 %v253, %v259
        %v270 = vsub.f32 1.0, %v252
        %v271 = vsub.f32 1.0, %v253
        %v272 = vmul.f32 %v270, %v266
        %v273 = vmul.f32 %v271, %v267
        %v274 = vadd.f32 %v268, %v272
        %v275 = vadd.f32 %v269, %v273
        %v276 = vsub.f32 0.0, %v274
        %v277 = vsub.f32 0.0, %v275
        %vm278 = vcmp.gt.f32.partialorder %v252, 0.5
        %vm279 = vcmp.gt.f32.partialorder %v253, 0.5
        %vm280 = vcmp.lt.f32.partialorder %v252, 0.5
        %vm281 = vcmp.lt.f32.partialorder %v253, 0.5
        %s282 = sadd.s32 %s249, 16
        %s283 = smul.u32 %s282, 128
        %p284 = scmp.le.s32.totalorder %s283, 2048
        // Predicated region
        $region41: #{tpu_custom_call.1} parent=27 // pred_check
          %p285 = pneg %p284
        $region42: #{tpu_custom_call.1} parent=27 // pred_check_branch
          %287 = sbr.rel (%p285) target = $region44
        $region43: #{tpu_custom_call.1} parent=27 // pred_region
          %v288 = vld [vmem:[#allocation2] sm:$0xff]
          %v289 = vsel %vm278, 1.0, 0.0
          %v290 = vsel %vm279, 1.0, 0.0
          %v291 = vadd.f32 %v289, %v290
          %v292 = vadd.f32 %v288, %v291
          %293 = vst [vmem:[#allocation2] sm:$0xff] %v292
          %s294 = scalar_lea.vmem [#allocation2], 8
          %v295 = vld [vmem:[%s294] sm:$0xff]
          %v296 = vsel %vm280, 1.0, 0.0
          %v297 = vsel %vm281, 1.0, 0.0
          %v298 = vadd.f32 %v296, %v297
          %v299 = vadd.f32 %v295, %v298
          %300 = vst [vmem:[%s294] sm:$0xff] %v299
          %s301 = scalar_lea.vmem [#allocation2], 16
          %v302 = vld [vmem:[%s301] sm:$0xff]
          %v303 = vsel %vm278, %v276, 0.0
          %v304 = vsel %vm279, %v277, 0.0
          %v305 = vadd.f32 %v303, %v304
          %v306 = vadd.f32 %v302, %v305
          %307 = vst [vmem:[%s301] sm:$0xff] %v306
          %s308 = scalar_lea.vmem [#allocation2], 24
          %v309 = vld [vmem:[%s308] sm:$0xff]
          %v310 = vsel %vm280, %v276, 0.0
          %v311 = vsel %vm281, %v277, 0.0
          %v312 = vadd.f32 %v310, %v311
          %v313 = vadd.f32 %v309, %v312
          %314 = vst [vmem:[%s308] sm:$0xff] %v313
        $region44: #{tpu_custom_call.1} parent=27 // pred_fallthru
          _
        %p315 = scmp.gt.s32.totalorder %s283, 2048
        // Predicated region
        $region45: #{tpu_custom_call.1} parent=27 // pred_check
          %p316 = pneg %p315
        $region46: #{tpu_custom_call.1} parent=27 // pred_check_branch
          %318 = sbr.rel (%p316) target = $region48
        $region47: #{tpu_custom_call.1} parent=27 // pred_region
          %v319 = vlaneseq
          %v320 = vshrl.u32 %v319, 7
          %v321 = vadd.s32 %v320, 8
          %v322 = vlaneseq
          %v323 = vand.u32 %v322, 127
          %v324 = vstv %s249
          %v325 = vadd.s32 %v324, %v320
          %v326 = vadd.s32 %v324, %v321
          %v327 = vmul.u32 %v325, 128
          %v328 = vmul.u32 %v326, 128
          %v329 = vadd.s32 %v327, %v323
          %v330 = vadd.s32 %v328, %v323
          %vm331 = vcmp.lt.s32.totalorder %v329, 2048
          %vm332 = vcmp.lt.s32.totalorder %v330, 2048
          %vm333 = vmand %vm331, %vm278
          %vm334 = vmand %vm332, %vm279
          %vm335 = vmand %vm331, %vm280
          %vm336 = vmand %vm332, %vm281
          %v337 = vld [vmem:[#allocation2] sm:$0xff]
          %v338 = vsel %vm333, 1.0, 0.0
          %v339 = vsel %vm334, 1.0, 0.0
          %v340 = vadd.f32 %v338, %v339
          %v341 = vadd.f32 %v337, %v340
          %342 = vst [vmem:[#allocation2] sm:$0xff] %v341
          %s343 = scalar_lea.vmem [#allocation2], 8
          %v344 = vld [vmem:[%s343] sm:$0xff]
          %v345 = vsel %vm335, 1.0, 0.0
          %v346 = vsel %vm336, 1.0, 0.0
          %v347 = vadd.f32 %v345, %v346
          %v348 = vadd.f32 %v344, %v347
          %349 = vst [vmem:[%s343] sm:$0xff] %v348
          %s350 = scalar_lea.vmem [#allocation2], 16
          %v351 = vld [vmem:[%s350] sm:$0xff]
          %v352 = vsel %vm333, %v276, 0.0
          %v353 = vsel %vm334, %v277, 0.0
          %v354 = vadd.f32 %v352, %v353
          %v355 = vadd.f32 %v351, %v354
          %356 = vst [vmem:[%s350] sm:$0xff] %v355
          %s357 = scalar_lea.vmem [#allocation2], 24
          %v358 = vld [vmem:[%s357] sm:$0xff]
          %v359 = vsel %vm335, %v276, 0.0
          %v360 = vsel %vm336, %v277, 0.0
          %v361 = vadd.f32 %v359, %v360
          %v362 = vadd.f32 %v358, %v361
          %363 = vst [vmem:[%s357] sm:$0xff] %v362
        $region48: #{tpu_custom_call.1} parent=27 // pred_fallthru
          _
        // Predicated region
        $region49: #{tpu_custom_call.1} parent=27 // pred_check
          %p364 = pneg %p240
        $region50: #{tpu_custom_call.1} parent=27 // pred_check_branch
          %366 = sbr.rel (%p364) target = $region52
        $region51: #{tpu_custom_call.1} parent=27 // pred_region
          %v367 = vld [vmem:[#allocation2] sm:$0xff]
          %v368 = vld [vmem:[#allocation2 + $0x8] sm:$0xff]
          %v369 = vld [vmem:[#allocation2 + $0x10] sm:$0xff]
          %v370 = vld [vmem:[#allocation2 + $0x18] sm:$0xff]
          %371 = vst [vmem:[%s231] sm:$0xff] %v367
          %372 = vst [vmem:[%s231 + $0x8] sm:$0xff] %v368
          %373 = vst [vmem:[%s231 + $0x10] sm:$0xff] %v369
          %374 = vst [vmem:[%s231 + $0x18] sm:$0xff] %v370
        $region52: #{tpu_custom_call.1} parent=27 // pred_fallthru
          _
        %s375 = sand.u32 %s106, 1
        %s376 = scalar_lea.sflag [#allocation5], %s375
        %s377 = sand.u32 %s106, 1
        %s378 = smul.addr %s377, 32
        %s379 = scalar_lea.vmem [#allocation8], %s378
        // Predicated region
        $region53: #{tpu_custom_call.1} parent=27 // pred_check
          %p380 = pneg %p116
        $region54: #{tpu_custom_call.1} parent=27 // pred_check_branch
          %382 = sbr.rel (%p380) target = $region56
        $region55: #{tpu_custom_call.1} parent=27 // pred_region
          %s384 = ssub.s32 512, 512
          %385 = vsyncadd %s376, %s384
          %s386 = smul.addr %s26, 4
          %s387 = smul.addr %s386, 128
          %s388 = scalar_lea.hbm %s2, %s387
          %s389 = sshll.u32 %s379, 4
          %s390 = int_to_ptr.vmem [resolvable:$true] %s389
          %395 = dma.vmem_to_hbm [thread:$0]  %s390, 512, %s388, %s376, 128, 128, 8
        $region56: #{tpu_custom_call.1} parent=27 // pred_fallthru
          _
      $region28: #{tpu_custom_call.1} parent=5 // pred_fallthru
        _
      %p396 = scmp.le.s32.totalorder 2, %s17
      // Predicated region
      $region57: #{tpu_custom_call.1} parent=5 // pred_check
        %p397 = pneg %p396
      $region58: #{tpu_custom_call.1} parent=5 // pred_check_branch
        %399 = sbr.rel (%p397) target = $region60
      $region59: #{tpu_custom_call.1} parent=5 // pred_region
        %s400 = ssub.s32 %s17, 2
        // Predicated region
        $region61: #{tpu_custom_call.1} parent=59 // pred_check
          %p401 = pneg %p122
        $region62: #{tpu_custom_call.1} parent=59 // pred_check_branch
          %403 = sbr.rel (%p401) target = $region64
        $region63: #{tpu_custom_call.1} parent=59 // pred_region
          %s404 = sand.u32 %s107, 1
          %s405 = scalar_lea.sflag [#allocation5], %s404
          %s406 = sand.u32 %s107, 1
          %s407 = smul.addr %s406, 32
          %s408 = scalar_lea.vmem [#allocation8], %s407
          %409 = dma.done %s405, 512
        $region64: #{tpu_custom_call.1} parent=59 // pred_fallthru
          _
      $region60: #{tpu_custom_call.1} parent=5 // pred_fallthru
        _
    $region6: #{tpu_custom_call.1} parent=1 // loop_footer
      %s21 = sadd.s32 1, %s17
    $region7: #{tpu_custom_call.1} parent=1 // loop_footer_branch
      %16 = sbr.rel target = $region3
    $region8: #{tpu_custom_call.1} parent=1 // loop_exit
      _
    %410 = vsyncpa [#allocation4], 1
    %s411 = scalar_lea.sflag [#allocation4], 1
    %412 = vsyncpa %s411, 1
    %413 = vsyncpa [#allocation7], 1
    %s414 = scalar_lea.sflag [#allocation7], 1
    %415 = vsyncpa %s414, 1
    %416 = vsyncpa [#allocation5], 1
    %s417 = scalar_lea.sflag [#allocation5], 1
    %418 = vsyncpa %s417, 1

</llo_original>
